<compile_context>
chip_gen: v5e
topology: v5e:2x2
jax: 0.10.0
libtpu: 0.0.40
codegen_flags: <defaults>
</compile_context>

<pallas_src>
import functools

import jax
import jax.numpy as jnp
from jax.experimental import pallas as pl
from jax.experimental.pallas import tpu as pltpu


def _round_up(n, m):
    return ((n + m - 1) // m) * m


# ----------------------------------------------------------------------------
# Kernel: fused MLP forward on one (tb, .) batch tile.  The single packed
# parameter array is VMEM-resident across grid steps (constant index_map);
# activations are pipelined.
# ----------------------------------------------------------------------------
def _reward_net_kernel(robot_ref, env_ref, p_ref, out_ref, *,
                       d_in, d_env, n_hidden, off_env, off_h, off_tail):
    cdt = p_ref.dtype                      # weight compute dtype (f32 or bf16)
    f32 = jnp.float32
    H = p_ref.shape[1]

    # Fused first layer: two accumulating MXU pushes replace
    # concat(robot, env) + two branch GEMMs (block-diagonal packed weight).
    b1 = p_ref[off_tail:off_tail + 1, :].astype(f32)                     # (1, H)
    h = jnp.dot(robot_ref[...], p_ref[0:d_in, :], preferred_element_type=f32)
    h = h + jnp.dot(env_ref[...], p_ref[off_env:off_env + d_env, :],
                    preferred_element_type=f32)
    h = jnp.maximum(h + b1, 0.0)                                         # (tb, H) f32

    # Hidden layers.  Dropout(0.3) is identity in eval mode.
    for i in range(n_hidden):
        w = p_ref[off_h + i * H: off_h + (i + 1) * H, :]                 # (H, H)
        b = p_ref[off_tail + 1 + i: off_tail + 2 + i, :].astype(f32)     # (1, H)
        h = jnp.dot(h.astype(cdt), w, preferred_element_type=f32)
        h = jnp.maximum(h + b, 0.0)

    # Output layer (H -> 1): VPU multiply + XLU lane reduce (no N=1 MXU work),
    # then relayout (tb, 1) -> (1, tb) so the store is lane-dense (unmasked vst).
    r_wout = off_tail + 1 + n_hidden
    w_out = p_ref[r_wout:r_wout + 1, :].astype(f32)                      # (1, H)
    b_out = p_ref[r_wout + 1:r_wout + 2, 0:1].astype(f32)                # (1, 1)
    scores = jnp.sum(h * w_out, axis=-1, keepdims=True) + b_out          # (tb, 1)
    out_ref[...] = scores.reshape(out_ref.shape)                          # (1, tb)


# ----------------------------------------------------------------------------
# Host-side packing: every parameter into ONE row-stacked (R, 128) array.
# Row layout (each section padded to a multiple of 16 sublanes):
#   [0           : d_in            ]  robot weight  -> cols [0:H/2]
#   [off_env     : off_env + d_env ]  env weight    -> cols [H/2:H]
#   [off_h + i*H : off_h + (i+1)*H ]  hidden weight i
#   [off_tail    ]                    fused first-layer bias (b_in ++ b_emb)
#   [off_tail+1+i]                    hidden bias i
#   [off_tail+1+n_hidden]             output weight row (w_out^T)
#   [off_tail+2+n_hidden]             output bias (broadcast; column 0 is used)
# ----------------------------------------------------------------------------
def pack_params(params, *, n_hidden=2, param_dtype=jnp.float32):
    w_in, w_emb = params["w_in"], params["w_emb"]
    d_in, half = w_in.shape
    d_env = w_emb.shape[0]
    H = 2 * half

    align = 16                                   # sublane-tile aligned for f32 and bf16
    off_env = _round_up(d_in, align)
    off_h = off_env + _round_up(d_env, align)
    off_tail = off_h + n_hidden * H
    rows = off_tail + _round_up(n_hidden + 3, align)

    P = jnp.zeros((rows, H), jnp.float32)
    P = P.at[:d_in, :half].set(w_in)
    P = P.at[off_env:off_env + d_env, half:].set(w_emb)
    for i in range(n_hidden):
        P = P.at[off_h + i * H: off_h + (i + 1) * H, :].set(params[f"w_h{i}"])
    b1 = jnp.concatenate([params["b_in"], params["b_emb"]], axis=-1)      # (1, H)
    P = P.at[off_tail:off_tail + 1, :].set(b1)
    for i in range(n_hidden):
        P = P.at[off_tail + 1 + i: off_tail + 2 + i, :].set(params[f"b_h{i}"])
    P = P.at[off_tail + 1 + n_hidden: off_tail + 2 + n_hidden, :].set(params["w_out"].T)
    P = P.at[off_tail + 2 + n_hidden: off_tail + 3 + n_hidden, :].set(
        jnp.broadcast_to(params["b_out"], (1, H)))

    # Note: in the bf16 path biases/w_out are also bf16-quantized (upcast to f32
    # in-kernel before the add); negligible next to bf16 matmul quantization.
    return {
        "params": P.astype(param_dtype),
        "meta": dict(off_env=off_env, off_h=off_h, off_tail=off_tail),
    }


# ----------------------------------------------------------------------------
# Batch-tile policy.
# ----------------------------------------------------------------------------
def _pick_tb(B, tb, num_cores, align):
    if num_cores is None:
        try:
            num_cores = getattr(jax.devices()[0], "num_cores", 1) or 1
        except Exception:  # pragma: no cover
            num_cores = 1
    b_pad = _round_up(B, align)
    if tb is None:
        if num_cores >= 2 and B >= 256:
            # >=2 grid steps so megacore sharding feeds both TensorCores (v7x).
            tb = min(512, _round_up(pl.cdiv(B, num_cores), 128))
        else:
            # Single TC (v5e/v6e): fewest grid steps; per-step overhead dominates.
            tb = min(b_pad, 2048)
    tb = max(align, min(_round_up(tb, align), max(b_pad, align)))
    if tb < b_pad:
        # Multi-step grid -> force 128-multiple tiles so the (1, tb) output
        # blocks stay lane-aligned (unmasked full-vreg stores).
        tb = _round_up(tb, 128)
    return tb


# ----------------------------------------------------------------------------
# Wrapper: one pallas_call, batch grid, parameters VMEM-resident, lane-dense out.
# ----------------------------------------------------------------------------
def reward_net_forward(robot, env_vector, packed, *, n_hidden=2, tb=None, num_cores=None):
    B, d_in = robot.shape
    d_env = env_vector.shape[1]
    p = packed["params"]
    meta = packed["meta"]
    cdt = p.dtype

    # Pre-cast activations to the weight dtype (halves activation DMA bytes on
    # the bf16 path; no-op on f32).  Accumulation stays f32 inside the kernel.
    robot = robot.astype(cdt)
    env_vector = env_vector.astype(cdt)

    align = 16 if cdt == jnp.bfloat16 else 8
    tb = _pick_tb(B, tb, num_cores, align)
    nt = pl.cdiv(B, tb)
    P_out = nt * tb
    H = p.shape[1]

    kernel = functools.partial(
        _reward_net_kernel, d_in=d_in, d_env=d_env, n_hidden=n_hidden, **meta)

    itemsize = jnp.dtype(cdt).itemsize
    flops = 2 * B * H * (d_in + d_env + n_hidden * H + 1)
    bytes_accessed = (B * (d_in + d_env) * itemsize
                      + p.size * itemsize + P_out * 4)

    out = pl.pallas_call(
        kernel,
        out_shape=jax.ShapeDtypeStruct((1, P_out), jnp.float32),
        grid=(nt,),
        in_specs=[
            pl.BlockSpec((tb, d_in), lambda i: (i, 0)),     # robot activations (pipelined)
            pl.BlockSpec((tb, d_env), lambda i: (i, 0)),    # env activations   (pipelined)
            pl.BlockSpec(p.shape, lambda i: (0, 0)),        # all params, VMEM-resident
        ],
        out_specs=pl.BlockSpec((1, tb), lambda i: (0, i)),  # lane-dense output row
        compiler_params=pltpu.CompilerParams(
            dimension_semantics=("parallel",)),             # megacore on v7x
        cost_estimate=pl.CostEstimate(
            flops=flops, transcendentals=0, bytes_accessed=bytes_accessed),
    )(robot, env_vector, p)

    return out[0, :B].reshape(B, 1)


# ----------------------------------------------------------------------------
# Deterministic parameter construction (mimics nn.Linear init: U(-k, k),
# k = 1/sqrt(fan_in)); weights stored pre-transposed as (in_features, out).
# ----------------------------------------------------------------------------
def init_params(key, input_length, env_length, hidden=128, n_hidden=2):
    half = hidden // 2

    def linear(key, fan_in, fan_out):
        kw, kb = jax.random.split(key)
        bound = 1.0 / jnp.sqrt(jnp.float32(fan_in))
        w = jax.random.uniform(kw, (fan_in, fan_out), jnp.float32, -bound, bound)
        b = jax.random.uniform(kb, (1, fan_out), jnp.float32, -bound, bound)
        return w, b

    keys = jax.random.split(key, n_hidden + 3)
    params = {}
    params["w_in"], params["b_in"] = linear(keys[0], input_length, half)
    params["w_emb"], params["b_emb"] = linear(keys[1], env_length, half)
    for i in range(n_hidden):
        params[f"w_h{i}"], params[f"b_h{i}"] = linear(keys[2 + i], hidden, hidden)
    params["w_out"], params["b_out"] = linear(keys[-1], hidden, 1)
    return params


# Pure-JAX reference (unfused, same math as the PyTorch module in eval mode).
def reward_net_reference(robot, env_vector, p, n_hidden=2):
    x1 = jnp.maximum(robot @ p["w_in"] + p["b_in"], 0.0)
    x2 = jnp.maximum(env_vector @ p["w_emb"] + p["b_emb"], 0.0)
    x = jnp.concatenate([x1, x2], axis=-1)
    for i in range(n_hidden):
        x = jnp.maximum(x @ p[f"w_h{i}"] + p[f"b_h{i}"], 0.0)
    return x @ p["w_out"] + p["b_out"]


if __name__ == "__main__":
    B, input_length, env_length, hidden = 8, 16, 8, 128

    key = jax.random.PRNGKey(0)
    k_params, k_robot, k_env, k_robot_big, k_env_big = jax.random.split(key, 5)

    params = init_params(k_params, input_length, env_length, hidden)
    robot = jax.random.normal(k_robot, (B, input_length), jnp.float32)
    env_vector = jax.random.normal(k_env, (B, env_length), jnp.float32)
    ref = reward_net_reference(robot, env_vector, params)

    # f32 path (default).
    packed_f32 = pack_params(params)
    out = jax.block_until_ready(reward_net_forward(robot, env_vector, packed_f32))
    assert out.shape == (B, 1)
    assert jnp.allclose(out, ref, atol=1e-4, rtol=1e-4)

    # bf16 weight path (v6e/v7x MXU fast path; f32 accumulation, bf16 activations).
    packed_bf16 = pack_params(params, param_dtype=jnp.bfloat16)
    out_bf16 = jax.block_until_ready(
        reward_net_forward(robot, env_vector, packed_bf16))
    assert out_bf16.shape == (B, 1)
    assert jnp.allclose(out_bf16, ref, atol=1e-1, rtol=1e-1)

    # Larger, non-multiple batch exercises grid>1, partial last tile and the
    # multi-block lane-dense output path (tb forced to 256 -> grid=(3,)).
    Bb = 600
    robot_b = jax.random.normal(k_robot_big, (Bb, input_length), jnp.float32)
    env_b = jax.random.normal(k_env_big, (Bb, env_length), jnp.float32)
    out_b = jax.block_until_ready(
        reward_net_forward(robot_b, env_b, packed_f32, tb=256))
    ref_b = reward_net_reference(robot_b, env_b, params)
    assert out_b.shape == (Bb, 1)
    assert jnp.allclose(out_b, ref_b, atol=1e-4, rtol=1e-4)

    print("KERNEL_OK")
</pallas_src>

<mosaic_0001>
module attributes {stable_mosaic.version = 11 : i64} {
  func.func @_reward_net_kernel(%arg0: i32, %arg1: memref<8x16xf32, #tpu.memory_space<vmem>>, %arg2: memref<8x8xf32, #tpu.memory_space<vmem>>, %arg3: memref<304x128xf32, #tpu.memory_space<vmem>>, %arg4: memref<1x8xf32, #tpu.memory_space<vmem>>) attributes {dimension_semantics = [#tpu.dimension_semantics<parallel>], iteration_bounds = array<i64: 1>, scalar_prefetch = 0 : i64, scratch_operands = 0 : i64, tpu.core_type = #tpu.core_type<tc>, window_params = [{transform_indices = @transform_0, window_bounds = array<i64: 8, 16>}, {transform_indices = @transform_1, window_bounds = array<i64: 8, 8>}, {pipeline_mode = #tpu.pipeline_mode<synchronous>, transform_indices = @transform_2, window_bounds = array<i64: 304, 128>}, {transform_indices = @transform_3, window_bounds = array<i64: 1, 8>}]} {
    %c288 = arith.constant 288 : index
    %c0 = arith.constant 0 : index
    %0 = vector.load %arg3[%c288, %c0] : memref<304x128xf32, #tpu.memory_space<vmem>>, vector<1x128xf32>
    %c0_0 = arith.constant 0 : index
    %c0_1 = arith.constant 0 : index
    %1 = vector.load %arg1[%c0_0, %c0_1] : memref<8x16xf32, #tpu.memory_space<vmem>>, vector<8x16xf32>
    %c0_2 = arith.constant 0 : index
    %c0_3 = arith.constant 0 : index
    %2 = vector.load %arg3[%c0_2, %c0_3] : memref<304x128xf32, #tpu.memory_space<vmem>>, vector<16x128xf32>
    %cst = arith.constant dense<0.000000e+00> : vector<8x128xf32>
    %3 = tpu.matmul %1, %2, %cst {dimension_numbers = #tpu.dot_dimension_numbers<[1], [0], [0], [1], [0, 0, 1, 1], [], []>} : vector<8x16xf32>, vector<16x128xf32>, vector<8x128xf32> -> vector<8x128xf32>
    %c0_4 = arith.constant 0 : index
    %c0_5 = arith.constant 0 : index
    %4 = vector.load %arg2[%c0_4, %c0_5] : memref<8x8xf32, #tpu.memory_space<vmem>>, vector<8x8xf32>
    %c16 = arith.constant 16 : index
    %c0_6 = arith.constant 0 : index
    %5 = vector.load %arg3[%c16, %c0_6] : memref<304x128xf32, #tpu.memory_space<vmem>>, vector<8x128xf32>
    %cst_7 = arith.constant dense<0.000000e+00> : vector<8x128xf32>
    %6 = tpu.matmul %4, %5, %cst_7 {dimension_numbers = #tpu.dot_dimension_numbers<[1], [0], [0], [1], [0, 0, 1, 1], [], []>} : vector<8x8xf32>, vector<8x128xf32>, vector<8x128xf32> -> vector<8x128xf32>
    %7 = arith.addf %3, %6 : vector<8x128xf32>
    %8 = vector.broadcast %0 : vector<1x128xf32> to vector<8x128xf32>
    %9 = arith.addf %7, %8 : vector<8x128xf32>
    %cst_8 = arith.constant 0.000000e+00 : f32
    %10 = vector.broadcast %cst_8 : f32 to vector<8x128xf32>
    %11 = arith.maximumf %9, %10 : vector<8x128xf32>
    %c32 = arith.constant 32 : index
    %c0_9 = arith.constant 0 : index
    %12 = vector.load %arg3[%c32, %c0_9] : memref<304x128xf32, #tpu.memory_space<vmem>>, vector<128x128xf32>
    %c289 = arith.constant 289 : index
    %c0_10 = arith.constant 0 : index
    %13 = vector.load %arg3[%c289, %c0_10] : memref<304x128xf32, #tpu.memory_space<vmem>>, vector<1x128xf32>
    %cst_11 = arith.constant dense<0.000000e+00> : vector<8x128xf32>
    %14 = tpu.matmul %11, %12, %cst_11 {dimension_numbers = #tpu.dot_dimension_numbers<[1], [0], [0], [1], [0, 0, 1, 1], [], []>} : vector<8x128xf32>, vector<128x128xf32>, vector<8x128xf32> -> vector<8x128xf32>
    %15 = vector.broadcast %13 : vector<1x128xf32> to vector<8x128xf32>
    %16 = arith.addf %14, %15 : vector<8x128xf32>
    %cst_12 = arith.constant 0.000000e+00 : f32
    %17 = vector.broadcast %cst_12 : f32 to vector<8x128xf32>
    %18 = arith.maximumf %16, %17 : vector<8x128xf32>
    %c160 = arith.constant 160 : index
    %c0_13 = arith.constant 0 : index
    %19 = vector.load %arg3[%c160, %c0_13] : memref<304x128xf32, #tpu.memory_space<vmem>>, vector<128x128xf32>
    %c290 = arith.constant 290 : index
    %c0_14 = arith.constant 0 : index
    %20 = vector.load %arg3[%c290, %c0_14] : memref<304x128xf32, #tpu.memory_space<vmem>>, vector<1x128xf32>
    %cst_15 = arith.constant dense<0.000000e+00> : vector<8x128xf32>
    %21 = tpu.matmul %18, %19, %cst_15 {dimension_numbers = #tpu.dot_dimension_numbers<[1], [0], [0], [1], [0, 0, 1, 1], [], []>} : vector<8x128xf32>, vector<128x128xf32>, vector<8x128xf32> -> vector<8x128xf32>
    %22 = vector.broadcast %20 : vector<1x128xf32> to vector<8x128xf32>
    %23 = arith.addf %21, %22 : vector<8x128xf32>
    %cst_16 = arith.constant 0.000000e+00 : f32
    %24 = vector.broadcast %cst_16 : f32 to vector<8x128xf32>
    %25 = arith.maximumf %23, %24 : vector<8x128xf32>
    %c291 = arith.constant 291 : index
    %c0_17 = arith.constant 0 : index
    %26 = vector.load %arg3[%c291, %c0_17] : memref<304x128xf32, #tpu.memory_space<vmem>>, vector<1x128xf32>
    %c292 = arith.constant 292 : index
    %c0_18 = arith.constant 0 : index
    %27 = vector.load %arg3[%c292, %c0_18] : memref<304x128xf32, #tpu.memory_space<vmem>>, vector<1x1xf32>
    %28 = vector.broadcast %26 : vector<1x128xf32> to vector<8x128xf32>
    %29 = arith.mulf %25, %28 : vector<8x128xf32>
    %cst_19 = arith.constant dense<0.000000e+00> : vector<8xf32>
    %30 = vector.multi_reduction <add>, %29, %cst_19 [1] : vector<8x128xf32> to vector<8xf32>
    %31 = vector.shape_cast %30 : vector<8xf32> to vector<8x1xf32>
    %32 = vector.broadcast %27 : vector<1x1xf32> to vector<8x1xf32>
    %33 = arith.addf %31, %32 : vector<8x1xf32>
    %34 = vector.shape_cast %33 : vector<8x1xf32> to vector<1x8xf32>
    %c0_20 = arith.constant 0 : index
    %c0_21 = arith.constant 0 : index
    %35 = vector.load %arg4[%c0_20, %c0_21] : memref<1x8xf32, #tpu.memory_space<vmem>>, vector<1x8xf32>
    tpu.vector_store %arg4[%c0_20, %c0_21], %34 {strides = array<i32>} : memref<1x8xf32, #tpu.memory_space<vmem>>, vector<1x8xf32>,
    return
  }
  func.func @transform_0(%arg0: i32) -> (i32, i32) {
    %c0_i32 = arith.constant 0 : i32
    %c0_i32_0 = arith.constant 0 : i32
    return %arg0, %c0_i32 : i32, i32
  }
  func.func @transform_1(%arg0: i32) -> (i32, i32) {
    %c0_i32 = arith.constant 0 : i32
    %c0_i32_0 = arith.constant 0 : i32
    return %arg0, %c0_i32 : i32, i32
  }
  func.func @transform_2(%arg0: i32) -> (i32, i32) {
    %c0_i32 = arith.constant 0 : i32
    %c0_i32_0 = arith.constant 0 : i32
    %c0_i32_1 = arith.constant 0 : i32
    return %c0_i32, %c0_i32_0 : i32, i32
  }
  func.func @transform_3(%arg0: i32) -> (i32, i32) {
    %c0_i32 = arith.constant 0 : i32
    %c0_i32_0 = arith.constant 0 : i32
    return %c0_i32, %arg0 : i32, i32
  }
}

</mosaic_0001>

<llo_original>
// kernel: tpu_custom_call.1
$region0: #{tpu_custom_call.1}
  #allocation0 [shape = 'u32[]', space=smem, size = 0x4, offset = 0x4, fixed_abs, tag = 'smem constant byte address 0x4 - core index']
  #allocation1 [shape = 'u32[72,128]{1,0:T(1,128)}', space=vmem, size = 0x9000, scoped, tag = 'internal scratch']
  %s0 = inlined_call_operand.hbm [shape: f32[8,16], index: 0, kind: input, shape index: {}]
  %s1 = inlined_call_operand.hbm [shape: f32[8,8], index: 1, kind: input, shape index: {}]
  %s2 = inlined_call_operand.hbm [shape: f32[304,128], index: 2, kind: input, shape index: {}]
  %s3 = inlined_call_operand.hbm [shape: f32[1,8], index: 3, kind: output, shape index: {}]
  %s4 = sld [smem:[#allocation0]]
  $region34: #{tpu_custom_call.1} parent=0
    _
  %s6 = ssub.s32 1, %s4
  %s7 = scalar_select 0, %s6, %s4
  $region1: #{tpu_custom_call.1} parent=0
    #allocation2 [shape = 'u8[4096]{0}', space=vmem, size = 0x1000, scoped, tag = 'input window, operand 0, single buffered']
    #allocation3 [shape = 's32[1]{0}', space=sflag, size = 0x4, scoped, tag = 'scoped memory for tpu_custom_call.1']
    #allocation4 [shape = 's32[1]{0}', space=sflag, size = 0x4, scoped, tag = 'scoped memory for tpu_custom_call.1']
    #allocation5 [shape = 'u8[4096]{0}', space=vmem, size = 0x1000, scoped, tag = 'input window, operand 1, single buffered']
    #allocation6 [shape = 's32[1]{0}', space=sflag, size = 0x4, scoped, tag = 'scoped memory for tpu_custom_call.1']
    #allocation7 [shape = 'u8[155648]{0}', space=vmem, size = 0x26000, scoped, tag = 'input window, operand 2, single buffered']
    #allocation8 [shape = 'u8[512]{0}', space=vmem, size = 0x400, scoped, tag = 'output window, operand 0, single buffered']
    %8 = vsyncpa [#allocation3], 0
    %9 = vsyncpa [#allocation6], 0
    %10 = vsyncpa [#allocation4], 0
    // Predicated region
    $region2: #{tpu_custom_call.1} parent=1 // pred_check
      _
    $region3: #{tpu_custom_call.1} parent=1 // pred_check_branch
      %12 = sbr.rel (0) target = $region5
    $region4: #{tpu_custom_call.1} parent=1 // pred_region
      %14 = vsyncadd [#allocation3], 0
      %s16 = sshll.u32 %s0, 4
      %s17 = int_to_ptr.hbm [resolvable:$true] %s16
      %s18 = sshll.u32 [#allocation2], 4
      %s19 = int_to_ptr.vmem [resolvable:$true] %s18
      %21 = dma.hbm_to_vmem [thread:$0]  %s17, 128, %s19, [#allocation3]
    $region5: #{tpu_custom_call.1} parent=1 // pred_fallthru
      _
    // Predicated region
    $region6: #{tpu_custom_call.1} parent=1 // pred_check
      _
    $region7: #{tpu_custom_call.1} parent=1 // pred_check_branch
      %23 = sbr.rel (0) target = $region9
    $region8: #{tpu_custom_call.1} parent=1 // pred_region
      %25 = vsyncadd [#allocation6], 0
      %s27 = sshll.u32 %s1, 4
      %s28 = int_to_ptr.hbm [resolvable:$true] %s27
      %s29 = sshll.u32 [#allocation5], 4
      %s30 = int_to_ptr.vmem [resolvable:$true] %s29
      %32 = dma.hbm_to_vmem [thread:$0]  %s28, 128, %s30, [#allocation6]
    $region9: #{tpu_custom_call.1} parent=1 // pred_fallthru
      _
    // Predicated region
    $region10: #{tpu_custom_call.1} parent=1 // pred_check
      _
    $region11: #{tpu_custom_call.1} parent=1 // pred_check_branch
      %34 = sbr.rel (0) target = $region13
    $region12: #{tpu_custom_call.1} parent=1 // pred_region
      %36 = vsyncadd [#allocation6], 0
      %s37 = sshll.u32 %s2, 4
      %s38 = int_to_ptr.hbm [resolvable:$true] %s37
      %s39 = sshll.u32 [#allocation7], 4
      %s40 = int_to_ptr.vmem [resolvable:$true] %s39
      %45 = dma.hbm_to_vmem [thread:$0]  %s38, 4864, %s40, [#allocation6], 128, 128, 8
    $region13: #{tpu_custom_call.1} parent=1 // pred_fallthru
      _
    // Predicated region
    $region14: #{tpu_custom_call.1} parent=1 // pred_check
      _
    $region15: #{tpu_custom_call.1} parent=1 // pred_check_branch
      %47 = sbr.rel (0) target = $region17
    $region16: #{tpu_custom_call.1} parent=1 // pred_region
      %49 = dma.done [#allocation3], 128
    $region17: #{tpu_custom_call.1} parent=1 // pred_fallthru
      _
    // Predicated region
    $region18: #{tpu_custom_call.1} parent=1 // pred_check
      _
    $region19: #{tpu_custom_call.1} parent=1 // pred_check_branch
      %51 = sbr.rel (0) target = $region21
    $region20: #{tpu_custom_call.1} parent=1 // pred_region
      %53 = dma.done [#allocation6], 128
    $region21: #{tpu_custom_call.1} parent=1 // pred_fallthru
      _
    // Predicated region
    $region22: #{tpu_custom_call.1} parent=1 // pred_check
      _
    $region23: #{tpu_custom_call.1} parent=1 // pred_check_branch
      %55 = sbr.rel (0) target = $region25
    $region24: #{tpu_custom_call.1} parent=1 // pred_region
      %57 = dma.done [#allocation6], 4864
    $region25: #{tpu_custom_call.1} parent=1 // pred_fallthru
      _
    %v58 = vld [vmem:[#allocation7 + $0x120] sm:$0x1]
    %v59 = vld [vmem:[#allocation2] sm:$0xff]
    %v60 = vld [vmem:[#allocation7] sm:$0xff]
    %v61 = vld [vmem:[#allocation7 + $0x8] sm:$0xff]
    %v62 = vld [vmem:[#allocation5] sm:$0xff]
    %v63 = vld [vmem:[#allocation7 + $0x10] sm:$0xff]
    %vm64 = vcmask 64512
    %v66 = vsel %vm64, %v62, 0
    %68 = vmatpush.msra.mxu0 0.0
    %69 = vmatpush.msra.mxu0 0.0
    %70 = vmatpush.msra.mxu0 0.0
    %71 = vmatpush.msra.mxu0 0.0
    %72 = vmatpush.msra.mxu0 0.0
    %73 = vmatpush.msra.mxu0 0.0
    %74 = vmatpush.msra.mxu0 0.0
    %75 = vmatpush.msra.mxu0 0.0
    %76 = vmatpush.msra.mxu0 0.0
    %77 = vmatpush.msra.mxu0 0.0
    %78 = vmatpush.msra.mxu0 0.0
    %79 = vmatpush.msra.mxu0 0.0
    %80 = vmatpush.msra.mxu0 0.0
    %81 = vmatpush.msra.mxu0 0.0
    %82 = vmatpush.msra.mxu0 0.0
    %83 = vmatpush.msra.mxu0 %v63
    %84 = vmatmul.f32.gmra.mxu0 %v66
    %v85 = vpop.f32.mrf.mxu0
    %v86 = vadd.f32 0.0, %v85
    %87 = vdwg.mxu0
    %vm88 = vcmask 130048
    %v90 = vsel %vm88, %v59, 0
    %92 = vmatpush.msra.mxu0 0.0
    %93 = vmatpush.msra.mxu0 0.0
    %94 = vmatpush.msra.mxu0 0.0
    %95 = vmatpush.msra.mxu0 0.0
    %96 = vmatpush.msra.mxu0 0.0
    %97 = vmatpush.msra.mxu0 0.0
    %98 = vmatpush.msra.mxu0 0.0
    %99 = vmatpush.msra.mxu0 0.0
    %100 = vmatpush.msra.mxu0 0.0
    %101 = vmatpush.msra.mxu0 0.0
    %102 = vmatpush.msra.mxu0 0.0
    %103 = vmatpush.msra.mxu0 0.0
    %104 = vmatpush.msra.mxu0 0.0
    %105 = vmatpush.msra.mxu0 0.0
    %106 = vmatpush.msra.mxu0 %v61
    %107 = vmatpush.msra.mxu0 %v60
    %108 = vmatmul.f32.gmra.mxu0 %v90
    %v109 = vpop.f32.mrf.mxu0
    %v110 = vadd.f32 %v86, %v109
    %111 = vdwg.mxu0
    %v112 = vperm.slane %v58, 0
    %v113 = vadd.f32 %v110, %v112
    %v114 = vmax.f32 %v113, 0.0
    %v115 = vld [vmem:[#allocation7 + $0x20] sm:$0xff]
    %v116 = vld [vmem:[#allocation7 + $0x28] sm:$0xff]
    %v117 = vld [vmem:[#allocation7 + $0x30] sm:$0xff]
    %v118 = vld [vmem:[#allocation7 + $0x38] sm:$0xff]
    %v119 = vld [vmem:[#allocation7 + $0x40] sm:$0xff]
    %v120 = vld [vmem:[#allocation7 + $0x48] sm:$0xff]
    %v121 = vld [vmem:[#allocation7 + $0x50] sm:$0xff]
    %v122 = vld [vmem:[#allocation7 + $0x58] sm:$0xff]
    %v123 = vld [vmem:[#allocation7 + $0x60] sm:$0xff]
    %v124 = vld [vmem:[#allocation7 + $0x68] sm:$0xff]
    %v125 = vld [vmem:[#allocation7 + $0x70] sm:$0xff]
    %v126 = vld [vmem:[#allocation7 + $0x78] sm:$0xff]
    %v127 = vld [vmem:[#allocation7 + $0x80] sm:$0xff]
    %v128 = vld [vmem:[#allocation7 + $0x88] sm:$0xff]
    %v129 = vld [vmem:[#allocation7 + $0x90] sm:$0xff]
    %v130 = vld [vmem:[#allocation7 + $0x98] sm:$0xff]
    %v131 = vld [vmem:[#allocation7 + $0x121] sm:$0x1]
    %v132 = vperm.slane %v131, 0
    %133 = vmatpush.msra.mxu0 %v130
    %134 = vmatpush.msra.mxu0 %v129
    %135 = vmatpush.msra.mxu0 %v128
    %136 = vmatpush.msra.mxu0 %v127
    %137 = vmatpush.msra.mxu0 %v126
    %138 = vmatpush.msra.mxu0 %v125
    %139 = vmatpush.msra.mxu0 %v124
    %140 = vmatpush.msra.mxu0 %v123
    %141 = vmatpush.msra.mxu0 %v122
    %142 = vmatpush.msra.mxu0 %v121
    %143 = vmatpush.msra.mxu0 %v120
    %144 = vmatpush.msra.mxu0 %v119
    %145 = vmatpush.msra.mxu0 %v118
    %146 = vmatpush.msra.mxu0 %v117
    %147 = vmatpush.msra.mxu0 %v116
    %148 = vmatpush.msra.mxu0 %v115
    %149 = vmatmul.f32.gmra.mxu0 %v114
    %v150 = vpop.f32.mrf.mxu0
    %v151 = vadd.f32 %v132, %v150
    %152 = vdwg.mxu0
    %v153 = vmax.f32 %v151, 0.0
    %v154 = vld [vmem:[#allocation7 + $0xa0] sm:$0xff]
    %v155 = vld [vmem:[#allocation7 + $0xa8] sm:$0xff]
    %v156 = vld [vmem:[#allocation7 + $0xb0] sm:$0xff]
    %v157 = vld [vmem:[#allocation7 + $0xb8] sm:$0xff]
    %v158 = vld [vmem:[#allocation7 + $0xc0] sm:$0xff]
    %v159 = vld [vmem:[#allocation7 + $0xc8] sm:$0xff]
    %v160 = vld [vmem:[#allocation7 + $0xd0] sm:$0xff]
    %v161 = vld [vmem:[#allocation7 + $0xd8] sm:$0xff]
    %v162 = vld [vmem:[#allocation7 + $0xe0] sm:$0xff]
    %v163 = vld [vmem:[#allocation7 + $0xe8] sm:$0xff]
    %v164 = vld [vmem:[#allocation7 + $0xf0] sm:$0xff]
    %v165 = vld [vmem:[#allocation7 + $0xf8] sm:$0xff]
    %v166 = vld [vmem:[#allocation7 + $0x100] sm:$0xff]
    %v167 = vld [vmem:[#allocation7 + $0x108] sm:$0xff]
    %v168 = vld [vmem:[#allocation7 + $0x110] sm:$0xff]
    %v169 = vld [vmem:[#allocation7 + $0x118] sm:$0xff]
    %v170 = vld [vmem:[#allocation7 + $0x122] sm:$0x1]
    %v171 = vperm.slane %v170, 0
    %172 = vmatpush.msra.mxu0 %v169
    %173 = vmatpush.msra.mxu0 %v168
    %174 = vmatpush.msra.mxu0 %v167
    %175 = vmatpush.msra.mxu0 %v166
    %176 = vmatpush.msra.mxu0 %v165
    %177 = vmatpush.msra.mxu0 %v164
    %178 = vmatpush.msra.mxu0 %v163
    %179 = vmatpush.msra.mxu0 %v162
    %180 = vmatpush.msra.mxu0 %v161
    %181 = vmatpush.msra.mxu0 %v160
    %182 = vmatpush.msra.mxu0 %v159
    %183 = vmatpush.msra.mxu0 %v158
    %184 = vmatpush.msra.mxu0 %v157
    %185 = vmatpush.msra.mxu0 %v156
    %186 = vmatpush.msra.mxu0 %v155
    %187 = vmatpush.msra.mxu0 %v154
    %188 = vmatmul.f32.gmra.mxu0 %v153
    %v189 = vpop.f32.mrf.mxu0
    %v190 = vadd.f32 %v171, %v189
    %191 = vdwg.mxu0
    %v192 = vmax.f32 %v190, 0.0
    %v193 = vld [vmem:[#allocation7 + $0x123] sm:$0x1]
    %v194 = vld [vmem:[#allocation7 + $0x124] sm:$0x1]
    %v195 = vperm.slane %v193, 0
    %v196 = vmul.f32 %v192, %v195
    %197 = vadd.xlane.f32.xlu0 %v196
    %v198 = vpop.xlane.xlu0 %197
    %v199 = vperm.slane %v194, 0
    %v200 = vadd.f32 %v198, %v199
    %202 = vset.pattern.permute.xlu0 0
    %203 = vperm.xlu0 %202, %v200
    %v204 = vpop.permute.xlu0 %203
    %v205 = vlaneseq
    %v206 = vand.u32 %v205, 127
    %v207 = vperm.slane %v204, %v206
    %vm209 = vcmask 57344
    %210 = vst.msk [vmem:[#allocation8] sm:$0x1] %vm209, %v207
    // Predicated region
    $region26: #{tpu_custom_call.1} parent=1 // pred_check
      _
    $region27: #{tpu_custom_call.1} parent=1 // pred_check_branch
      %212 = sbr.rel (0) target = $region29
    $region28: #{tpu_custom_call.1} parent=1 // pred_region
      %214 = vsyncadd [#allocation4], 0
      %s216 = sshll.u32 [#allocation8], 4
      %s217 = int_to_ptr.vmem [resolvable:$true] %s216
      %s218 = sshll.u32 %s3, 4
      %s219 = int_to_ptr.hbm [resolvable:$true] %s218
      %221 = dma.vmem_to_hbm [thread:$0]  %s217, 16, %s219, [#allocation4]
    $region29: #{tpu_custom_call.1} parent=1 // pred_fallthru
      _
    // Predicated region
    $region30: #{tpu_custom_call.1} parent=1 // pred_check
      _
    $region31: #{tpu_custom_call.1} parent=1 // pred_check_branch
      %223 = sbr.rel (0) target = $region33
    $region32: #{tpu_custom_call.1} parent=1 // pred_region
      %225 = dma.done [#allocation4], 16
    $region33: #{tpu_custom_call.1} parent=1 // pred_fallthru
      _
    %226 = vsyncpa [#allocation3], 1
    %227 = vsyncpa [#allocation6], 1
    %228 = vsyncpa [#allocation4], 1

</llo_original>
